<compile_context>
chip_gen: v7x
topology: tpu7x:2x2x1
jax: 0.10.0
libtpu: 0.0.40
codegen_flags: <defaults>
</compile_context>

<pallas_src>
import functools

import jax
import jax.numpy as jnp
import numpy as np
from jax.experimental import pallas as pl
from jax.experimental.pallas import tpu as pltpu


def _round_up(x, m):
    return ((x + m - 1) // m) * m


def _accumulate_tile(num_ref, den_ref, contrib, wsum, row0, n_rows, tiles_full):
    """Accumulate per-label sums of contrib/wsum (tile_n, L) into the
    chunk-resident (1, 1, L) output blocks."""

    def _acc(cb, wb):
        num_ref[...] += jnp.sum(cb, axis=0, keepdims=True)[None]
        den_ref[...] += jnp.sum(wb, axis=0, keepdims=True)[None]

    if tiles_full:
        # Statically known: every tile lies fully inside [0, n_rows).
        _acc(contrib, wsum)
        return

    tile_rows = contrib.shape[0]
    is_full = row0 + tile_rows <= n_rows

    @pl.when(is_full)
    def _():
        _acc(contrib, wsum)

    @pl.when(jnp.logical_not(is_full))
    def _():
        # Tail / phantom tile: rows >= n_rows hold garbage (the block DMA
        # overruns the array); zero them BEFORE any reduction so NaN/Inf from
        # undefined HBM-edge contents can never leak into the sums.
        row = row0 + jax.lax.broadcasted_iota(jnp.int32, contrib.shape, 0)
        valid = row < n_rows
        _acc(jnp.where(valid, contrib, 0.0), jnp.where(valid, wsum, 0.0))


def _ml_ce_flat_kernel(logits_ref, target_ref, w_ref, num_ref, den_ref, *,
                       n_rows, tile_n, tiles_per_chunk, n_labels, n_classes,
                       tiles_full):
    """Small-L path: logits streamed as (tile_n, L*C) 2-D blocks; static
    per-label loop over lane slices keeps the sublane axis fully dense."""
    c = pl.program_id(0)
    i = pl.program_id(1)

    @pl.when(i == 0)
    def _init():
        num_ref[...] = jnp.zeros_like(num_ref)
        den_ref[...] = jnp.zeros_like(den_ref)

    lane_iota = jax.lax.broadcasted_iota(jnp.int32, (tile_n, n_classes), 1)
    lab_iota = jax.lax.broadcasted_iota(jnp.int32, (tile_n, n_labels), 1)

    contrib = jnp.zeros((tile_n, n_labels), jnp.float32)
    wsum = jnp.zeros((tile_n, n_labels), jnp.float32)

    for l in range(n_labels):  # static unroll; n_labels <= 16 on this path
        x_l = logits_ref[:, l * n_classes:(l + 1) * n_classes]   # (tn, C)
        t_l = target_ref[:, l:l + 1]                              # (tn, 1)
        w_l = w_ref[l:l + 1, :].astype(jnp.float32)               # (1, C)

        # max is exact in the native dtype; the f32 upcast fuses into the
        # subtract (no separately materialized f32 copy of the tile).
        m = jnp.max(x_l, axis=-1, keepdims=True)
        shifted = x_l.astype(jnp.float32) - m.astype(jnp.float32)  # (tn, C)
        lse = jnp.log(jnp.sum(jnp.exp(shifted), axis=-1, keepdims=True))

        sel = lane_iota == t_l                                     # (tn, C)
        picked = jnp.sum(jnp.where(sel, shifted, 0.0), axis=-1, keepdims=True)
        w_t = jnp.sum(jnp.where(sel, w_l, 0.0), axis=-1, keepdims=True)

        is_l = lab_iota == l
        contrib = jnp.where(is_l, w_t * (lse - picked), contrib)
        wsum = jnp.where(is_l, w_t, wsum)

    row0 = (c * tiles_per_chunk + i) * tile_n
    _accumulate_tile(num_ref, den_ref, contrib, wsum, row0, n_rows, tiles_full)


def _ml_ce_dense_kernel(logits_ref, target_ref, w_ref, num_ref, den_ref, *,
                        n_rows, tile_n, tiles_per_chunk, tiles_full):
    """Large-L path: logits streamed as (tile_n, L, C) 3-D blocks."""
    c = pl.program_id(0)
    i = pl.program_id(1)

    @pl.when(i == 0)
    def _init():
        num_ref[...] = jnp.zeros_like(num_ref)
        den_ref[...] = jnp.zeros_like(den_ref)

    x = logits_ref[...]                              # (tn, L, C) native dtype
    t = target_ref[...]                              # (tn, L) int32
    w = w_ref[...].astype(jnp.float32)               # (L, C)
    tn, n_labels, n_classes = x.shape

    m = jnp.max(x, axis=-1, keepdims=True)           # exact in native dtype
    shifted = x.astype(jnp.float32) - m.astype(jnp.float32)
    lse = jnp.log(jnp.sum(jnp.exp(shifted), axis=-1, keepdims=True))  # (tn,L,1)

    sel = (jax.lax.broadcasted_iota(jnp.int32, (tn, n_labels, n_classes), 2)
           == t[:, :, None])
    picked = jnp.sum(jnp.where(sel, shifted, 0.0), axis=-1, keepdims=True)
    w_t = jnp.sum(jnp.where(sel, w[None, :, :], 0.0), axis=-1)        # (tn, L)

    contrib = w_t * (lse - picked)[..., 0]                            # (tn, L)

    row0 = (c * tiles_per_chunk + i) * tile_n
    _accumulate_tile(num_ref, den_ref, contrib, w_t, row0, n_rows, tiles_full)


def _tpu_vmem_capacity_bytes():
    """Per-core VMEM capacity; falls back to 128 MiB (v5e/v6e) if unknown."""
    default = 128 * 1024 * 1024
    try:
        info = pltpu.get_tpu_info()
    except Exception:
        return default
    for attr in ("vmem_capacity_bytes", "vmem_size_bytes", "vmem_bytes"):
        v = getattr(info, attr, None)
        if v:
            try:
                v = int(v)
            except (TypeError, ValueError):
                continue
            if v > 0:
                return v
    return default


def _pick_tile_n(n_rows, n_labels, n_classes, itemsize, vmem_cap, flat):
    """Rows per streamed tile, sized against a generation-aware per-step VMEM
    working-set budget that accounts for the (8,128) lane/sublane padding of
    the streamed blocks AND the in-kernel f32 temporaries."""
    if flat:
        stream_row = _round_up(n_labels * n_classes, 128) * itemsize
        # ~2 live (tile_n, C) f32 slices + narrow (tile_n, 1/L) helpers/iotas,
        # all padded to 128 lanes.
        temp_row = 4 * (2 * _round_up(n_classes, 128) + 6 * 128)
    else:
        stream_row = (_round_up(n_labels, 8) * _round_up(n_classes, 128)
                      * itemsize)
        # ~4 live f32 copies of the padded (L, C) row (shifted/exp/select/...).
        temp_row = 4 * 4 * _round_up(n_labels, 8) * _round_up(n_classes, 128)
    tgt_row = 2 * _round_up(n_labels, 128) * 4        # int32, double-buffered
    eff_row = 2 * stream_row + tgt_row + temp_row     # double-buffered stream

    # ~half the scoped vmem limit requested below: ~48 MiB on 128-MiB v5e/v6e,
    # ~24 MiB on 64-MiB-per-core v7x.
    budget = (vmem_cap * 3 // 4) // 2
    tn = max(8, (budget // eff_row) // 8 * 8)
    return int(min(tn, n_rows))


def multi_label_cross_entropy_loss(output, target, weights, size_average=True,
                                   tile_n=None, flat_label_limit=16):
    """output: (B, S, L, C) float logits, target: (B, S, L) int class ids,
    weights: (L, C) per-label class weights.  Returns the scalar loss of the
    PyTorch MultiLabelCrossEntropyLoss module."""
    assert output.ndim == 4
    assert target.ndim == 3
    B, S, L, C = output.shape
    if target.shape != (B, S, L):
        raise ValueError(f"target shape {target.shape} != {(B, S, L)}")
    if weights.shape != (L, C):
        raise ValueError(f"weights shape {weights.shape} != {(L, C)}")

    N = B * S
    tgt = target.reshape(N, L).astype(jnp.int32)
    w_f32 = weights.astype(jnp.float32)
    itemsize = jnp.dtype(output.dtype).itemsize

    use_flat = L <= flat_label_limit
    # TODO(synk): L > flat_label_limit with C far below 128 still pays the 3-D
    # (L, C)->(8, 128) block padding; a segmented 2-D layout would fix it.

    vmem_cap = _tpu_vmem_capacity_bytes()
    vmem_limit = int(vmem_cap * 3 // 4)       # 96 MiB on v5e/v6e, 48 MiB on v7x

    if tile_n is None:
        tile_n = _pick_tile_n(N, L, C, itemsize, vmem_cap, use_flat)
    tile_n = int(min(tile_n, N))
    if tile_n < N:
        tile_n = max(8, (tile_n // 8) * 8)    # keep the (8,128) rule happy

    nt = pl.cdiv(N, tile_n)                   # total row tiles
    # Split the N reduction into 2 "parallel" chunks so v7x's two TensorCores
    # (and megacore parts) each reduce half; ~free on single-core chips.
    n_chunks = 2 if nt >= 2 else 1
    tpc = pl.cdiv(nt, n_chunks)               # tiles per chunk
    tiles_full = (N % tile_n == 0) and (nt == n_chunks * tpc)

    last_block = nt - 1

    def row_map(c, i):
        # Clamp phantom tiles (odd tile count) onto the last real tile; their
        # rows are masked out inside _accumulate_tile.
        return jnp.minimum(c * tpc + i, last_block)

    if use_flat:
        logits = output.reshape(N, L * C)     # free reshape, class axis minor
        kernel = functools.partial(
            _ml_ce_flat_kernel, n_rows=N, tile_n=tile_n, tiles_per_chunk=tpc,
            n_labels=L, n_classes=C, tiles_full=tiles_full)
        logits_spec = pl.BlockSpec((tile_n, L * C),
                                   lambda c, i: (row_map(c, i), 0))
    else:
        logits = output.reshape(N, L, C)
        kernel = functools.partial(
            _ml_ce_dense_kernel, n_rows=N, tile_n=tile_n, tiles_per_chunk=tpc,
            tiles_full=tiles_full)
        logits_spec = pl.BlockSpec((tile_n, L, C),
                                   lambda c, i: (row_map(c, i), 0, 0))

    cost = pl.CostEstimate(
        flops=int(8 * N * L * C),
        transcendentals=int(N * L * C + N * L),
        bytes_accessed=int(N * L * C * itemsize + N * L * 4 + L * C * 4
                           + 2 * n_chunks * L * 4),
    )

    num, den = pl.pallas_call(
        kernel,
        out_shape=(jax.ShapeDtypeStruct((n_chunks, 1, L), jnp.float32),
                   jax.ShapeDtypeStruct((n_chunks, 1, L), jnp.float32)),
        grid=(n_chunks, tpc),
        in_specs=[
            logits_spec,                                             # logits
            pl.BlockSpec((tile_n, L), lambda c, i: (row_map(c, i), 0)),  # tgt
            pl.BlockSpec((L, C), lambda c, i: (0, 0)),               # weights
        ],
        out_specs=(pl.BlockSpec((1, 1, L), lambda c, i: (c, 0, 0)),  # num
                   pl.BlockSpec((1, 1, L), lambda c, i: (c, 0, 0))),  # den
        compiler_params=pltpu.CompilerParams(
            dimension_semantics=("parallel", "arbitrary"),
            vmem_limit_bytes=vmem_limit),
        cost_estimate=cost,
    )(logits, tgt, w_f32)

    num_l = jnp.sum(num, axis=(0, 1))         # (L,) per-label weighted-NLL sum
    den_l = jnp.sum(den, axis=(0, 1))         # (L,) per-label weight sum

    if size_average:
        return jnp.mean(num_l / den_l)
    # size_average=False: each CrossEntropyLoss is a weighted *sum*, no /L.
    return jnp.sum(num_l)


def _reference(output, target, weights, size_average=True):
    """Pure-JAX reference of the PyTorch module."""
    B, S, L, C = output.shape
    loss = 0.0
    for i in range(L):
        x = output[:, :, i, :].reshape(-1, C).astype(jnp.float32)
        t = target[:, :, i].reshape(-1)
        w = weights[i].astype(jnp.float32)
        logp = jax.nn.log_softmax(x, axis=-1)
        nll = -jnp.take_along_axis(logp, t[:, None], axis=-1)[:, 0]
        w_t = w[t]
        if size_average:
            loss = loss + jnp.sum(w_t * nll) / jnp.sum(w_t)
        else:
            loss = loss + jnp.sum(w_t * nll)
    if size_average:
        loss = loss / L
    return loss


if __name__ == "__main__":
    key = jax.random.PRNGKey(0)
    k1, k2, k3, k4, k5 = jax.random.split(key, 5)

    # --- flat path (small L, C): (B, S, L, C) = (2, 8, 4, 16) ---
    B, S, L, C = 2, 8, 4, 16
    output = jax.random.normal(k1, (B, S, L, C), dtype=jnp.float32)
    target = jax.random.randint(k2, (B, S, L), 0, C, dtype=jnp.int32)
    weights = jax.random.uniform(k3, (L, C), dtype=jnp.float32,
                                 minval=0.5, maxval=1.5)

    ref = jax.block_until_ready(_reference(output, target, weights))

    # 1) auto tile (single block) on the flat path.
    loss = jax.block_until_ready(
        multi_label_cross_entropy_loss(output, target, weights))
    np.testing.assert_allclose(np.asarray(loss), np.asarray(ref),
                               rtol=2e-5, atol=2e-5)

    # 2) forced small tile -> 2 "parallel" chunks x 1 tile each.
    loss2 = jax.block_until_ready(
        multi_label_cross_entropy_loss(output, target, weights, tile_n=8))
    np.testing.assert_allclose(np.asarray(loss2), np.asarray(ref),
                               rtol=2e-5, atol=2e-5)

    # 3) ragged N (tail-masked tile) + native bf16 logits streaming.
    B3, S3 = 3, 5          # N = 15, not a multiple of the 8-row tile
    kk1, kk2 = jax.random.split(k4)
    out_bf16 = jax.random.normal(kk1, (B3, S3, L, C),
                                 dtype=jnp.float32).astype(jnp.bfloat16)
    tgt3 = jax.random.randint(kk2, (B3, S3, L), 0, C, dtype=jnp.int32)
    loss3 = jax.block_until_ready(
        multi_label_cross_entropy_loss(out_bf16, tgt3, weights, tile_n=8))
    ref3 = jax.block_until_ready(_reference(out_bf16, tgt3, weights))
    np.testing.assert_allclose(np.asarray(loss3), np.asarray(ref3),
                               rtol=1e-4, atol=1e-4)

    # 4) odd tile count -> chunk 1 gets a clamped phantom tile (fully masked).
    B4, S4 = 3, 7          # N = 21 with tile_n=8 -> 3 tiles over 2 chunks
    kk3, kk4 = jax.random.split(k5)
    out4 = jax.random.normal(kk3, (B4, S4, L, C), dtype=jnp.float32)
    tgt4 = jax.random.randint(kk4, (B4, S4, L), 0, C, dtype=jnp.int32)
    loss4 = jax.block_until_ready(
        multi_label_cross_entropy_loss(out4, tgt4, weights, tile_n=8))
    ref4 = jax.block_until_ready(_reference(out4, tgt4, weights))
    np.testing.assert_allclose(np.asarray(loss4), np.asarray(ref4),
                               rtol=2e-5, atol=2e-5)

    # 5) size_average=False (per-label weighted sums, no /L).
    loss5 = jax.block_until_ready(
        multi_label_cross_entropy_loss(output, target, weights,
                                       size_average=False, tile_n=8))
    ref5 = jax.block_until_ready(
        _reference(output, target, weights, size_average=False))
    np.testing.assert_allclose(np.asarray(loss5), np.asarray(ref5),
                               rtol=2e-5, atol=2e-5)

    # 6) dense 3-D path (L > flat_label_limit), multi-chunk multi-tile grid.
    B6, S6, L6, C6 = 4, 16, 20, 128
    kd1, kd2, kd3 = jax.random.split(k1, 3)
    out6 = jax.random.normal(kd1, (B6, S6, L6, C6), dtype=jnp.float32)
    tgt6 = jax.random.randint(kd2, (B6, S6, L6), 0, C6, dtype=jnp.int32)
    w6 = jax.random.uniform(kd3, (L6, C6), dtype=jnp.float32,
                            minval=0.5, maxval=1.5)
    loss6 = jax.block_until_ready(
        multi_label_cross_entropy_loss(out6, tgt6, w6, tile_n=16))
    ref6 = jax.block_until_ready(_reference(out6, tgt6, w6))
    np.testing.assert_allclose(np.asarray(loss6), np.asarray(ref6),
                               rtol=2e-5, atol=2e-5)

    print("KERNEL_OK")
</pallas_src>

<mosaic_0001>
module attributes {stable_mosaic.version = 11 : i64} {
  func.func @_ml_ce_flat_kernel(%arg0: i32, %arg1: i32, %arg2: memref<16x64xf32, #tpu.memory_space<vmem>>, %arg3: memref<16x4xi32, #tpu.memory_space<vmem>>, %arg4: memref<4x16xf32, #tpu.memory_space<vmem>>, %arg5: memref<1x1x4xf32, #tpu.memory_space<vmem>>, %arg6: memref<1x1x4xf32, #tpu.memory_space<vmem>>) attributes {dimension_semantics = [#tpu.dimension_semantics<parallel>, #tpu.dimension_semantics<arbitrary>], iteration_bounds = array<i64: 1, 1>, scalar_prefetch = 0 : i64, scratch_operands = 0 : i64, tpu.core_type = #tpu.core_type<tc>, window_params = [{transform_indices = @transform_0, window_bounds = array<i64: 16, 64>}, {transform_indices = @transform_1, window_bounds = array<i64: 16, 4>}, {pipeline_mode = #tpu.pipeline_mode<synchronous>, transform_indices = @transform_2, window_bounds = array<i64: 4, 16>}, {transform_indices = @transform_3, window_bounds = array<i64: 1, 1, 4>}, {transform_indices = @transform_4, window_bounds = array<i64: 1, 1, 4>}]} {
    %c0_i32 = arith.constant 0 : i32
    %0 = arith.cmpi eq, %arg1, %c0_i32 : i32
    %1 = arith.extui %0 : i1 to i32
    %c0_i32_0 = arith.constant 0 : i32
    %2 = arith.cmpi ne, %1, %c0_i32_0 : i32
    scf.if %2 {
      %cst_58 = arith.constant 0.000000e+00 : f32
      %151 = vector.broadcast %cst_58 : f32 to vector<1x1x4xf32>
      %c0_59 = arith.constant 0 : index
      %c0_60 = arith.constant 0 : index
      %c0_61 = arith.constant 0 : index
      %152 = vector.load %arg5[%c0_59, %c0_60, %c0_61] : memref<1x1x4xf32, #tpu.memory_space<vmem>>, vector<1x1x4xf32>
      tpu.vector_store %arg5[%c0_59, %c0_60, %c0_61], %151 {strides = array<i32>} : memref<1x1x4xf32, #tpu.memory_space<vmem>>, vector<1x1x4xf32>,
      %cst_62 = arith.constant 0.000000e+00 : f32
      %153 = vector.broadcast %cst_62 : f32 to vector<1x1x4xf32>
      %c0_63 = arith.constant 0 : index
      %c0_64 = arith.constant 0 : index
      %c0_65 = arith.constant 0 : index
      %154 = vector.load %arg6[%c0_63, %c0_64, %c0_65] : memref<1x1x4xf32, #tpu.memory_space<vmem>>, vector<1x1x4xf32>
      tpu.vector_store %arg6[%c0_63, %c0_64, %c0_65], %153 {strides = array<i32>} : memref<1x1x4xf32, #tpu.memory_space<vmem>>, vector<1x1x4xf32>,
    } else {
    }
    %3 = tpu.iota {dimensions = array<i32: 1>} : vector<16x16xi32>
    %4 = tpu.iota {dimensions = array<i32: 1>} : vector<16x4xi32>
    %cst = arith.constant 0.000000e+00 : f32
    %5 = vector.broadcast %cst : f32 to vector<16x4xf32>
    %cst_1 = arith.constant 0.000000e+00 : f32
    %6 = vector.broadcast %cst_1 : f32 to vector<16x4xf32>
    %c0 = arith.constant 0 : index
    %c0_2 = arith.constant 0 : index
    %7 = vector.load %arg2[%c0, %c0_2] : memref<16x64xf32, #tpu.memory_space<vmem>>, vector<16x16xf32>
    %c0_3 = arith.constant 0 : index
    %c0_4 = arith.constant 0 : index
    %8 = vector.load %arg3[%c0_3, %c0_4] : memref<16x4xi32, #tpu.memory_space<vmem>>, vector<16x1xi32>
    %c0_5 = arith.constant 0 : index
    %c0_6 = arith.constant 0 : index
    %9 = vector.load %arg4[%c0_5, %c0_6] : memref<4x16xf32, #tpu.memory_space<vmem>>, vector<1x16xf32>
    %cst_7 = arith.constant dense<0xFF800000> : vector<16xf32>
    %10 = vector.multi_reduction <maximumf>, %7, %cst_7 [1] : vector<16x16xf32> to vector<16xf32>
    %11 = vector.shape_cast %10 : vector<16xf32> to vector<16x1xf32>
    %12 = vector.broadcast %11 : vector<16x1xf32> to vector<16x16xf32>
    %13 = arith.subf %7, %12 : vector<16x16xf32>
    %14 = math.exp %13 : vector<16x16xf32>
    %cst_8 = arith.constant dense<0.000000e+00> : vector<16xf32>
    %15 = vector.multi_reduction <add>, %14, %cst_8 [1] : vector<16x16xf32> to vector<16xf32>
    %16 = vector.shape_cast %15 : vector<16xf32> to vector<16x1xf32>
    %17 = math.log %16 : vector<16x1xf32>
    %18 = vector.broadcast %8 : vector<16x1xi32> to vector<16x16xi32>
    %19 = arith.cmpi eq, %3, %18 : vector<16x16xi32>
    %cst_9 = arith.constant 0.000000e+00 : f32
    %20 = vector.broadcast %cst_9 : f32 to vector<16x16xf32>
    %21 = arith.select %19, %13, %20 : vector<16x16xi1>, vector<16x16xf32>
    %cst_10 = arith.constant dense<0.000000e+00> : vector<16xf32>
    %22 = vector.multi_reduction <add>, %21, %cst_10 [1] : vector<16x16xf32> to vector<16xf32>
    %23 = vector.shape_cast %22 : vector<16xf32> to vector<16x1xf32>
    %cst_11 = arith.constant 0.000000e+00 : f32
    %24 = vector.shape_cast %9 : vector<1x16xf32> to vector<1x16xf32>
    %25 = vector.broadcast %24 : vector<1x16xf32> to vector<16x16xf32>
    %26 = vector.broadcast %cst_11 : f32 to vector<16x16xf32>
    %27 = arith.select %19, %25, %26 : vector<16x16xi1>, vector<16x16xf32>
    %cst_12 = arith.constant dense<0.000000e+00> : vector<16xf32>
    %28 = vector.multi_reduction <add>, %27, %cst_12 [1] : vector<16x16xf32> to vector<16xf32>
    %29 = vector.shape_cast %28 : vector<16xf32> to vector<16x1xf32>
    %c0_i32_13 = arith.constant 0 : i32
    %30 = vector.broadcast %c0_i32_13 : i32 to vector<16x4xi32>
    %31 = arith.cmpi eq, %4, %30 : vector<16x4xi32>
    %32 = arith.subf %17, %23 : vector<16x1xf32>
    %33 = arith.mulf %29, %32 : vector<16x1xf32>
    %34 = vector.shape_cast %33 : vector<16x1xf32> to vector<16x1xf32>
    %35 = vector.broadcast %34 : vector<16x1xf32> to vector<16x4xf32>
    %36 = arith.select %31, %35, %5 : vector<16x4xi1>, vector<16x4xf32>
    %37 = vector.shape_cast %29 : vector<16x1xf32> to vector<16x1xf32>
    %38 = vector.broadcast %37 : vector<16x1xf32> to vector<16x4xf32>
    %39 = arith.select %31, %38, %6 : vector<16x4xi1>, vector<16x4xf32>
    %c0_14 = arith.constant 0 : index
    %c16 = arith.constant 16 : index
    %40 = vector.load %arg2[%c0_14, %c16] : memref<16x64xf32, #tpu.memory_space<vmem>>, vector<16x16xf32>
    %c0_15 = arith.constant 0 : index
    %c1 = arith.constant 1 : index
    %41 = vector.load %arg3[%c0_15, %c1] : memref<16x4xi32, #tpu.memory_space<vmem>>, vector<16x1xi32>
    %c1_16 = arith.constant 1 : index
    %c0_17 = arith.constant 0 : index
    %42 = vector.load %arg4[%c1_16, %c0_17] : memref<4x16xf32, #tpu.memory_space<vmem>>, vector<1x16xf32>
    %cst_18 = arith.constant dense<0xFF800000> : vector<16xf32>
    %43 = vector.multi_reduction <maximumf>, %40, %cst_18 [1] : vector<16x16xf32> to vector<16xf32>
    %44 = vector.shape_cast %43 : vector<16xf32> to vector<16x1xf32>
    %45 = vector.broadcast %44 : vector<16x1xf32> to vector<16x16xf32>
    %46 = arith.subf %40, %45 : vector<16x16xf32>
    %47 = math.exp %46 : vector<16x16xf32>
    %cst_19 = arith.constant dense<0.000000e+00> : vector<16xf32>
    %48 = vector.multi_reduction <add>, %47, %cst_19 [1] : vector<16x16xf32> to vector<16xf32>
    %49 = vector.shape_cast %48 : vector<16xf32> to vector<16x1xf32>
    %50 = math.log %49 : vector<16x1xf32>
    %51 = vector.broadcast %41 : vector<16x1xi32> to vector<16x16xi32>
    %52 = arith.cmpi eq, %3, %51 : vector<16x16xi32>
    %cst_20 = arith.constant 0.000000e+00 : f32
    %53 = vector.broadcast %cst_20 : f32 to vector<16x16xf32>
    %54 = arith.select %52, %46, %53 : vector<16x16xi1>, vector<16x16xf32>
    %cst_21 = arith.constant dense<0.000000e+00> : vector<16xf32>
    %55 = vector.multi_reduction <add>, %54, %cst_21 [1] : vector<16x16xf32> to vector<16xf32>
    %56 = vector.shape_cast %55 : vector<16xf32> to vector<16x1xf32>
    %cst_22 = arith.constant 0.000000e+00 : f32
    %57 = vector.shape_cast %42 : vector<1x16xf32> to vector<1x16xf32>
    %58 = vector.broadcast %57 : vector<1x16xf32> to vector<16x16xf32>
    %59 = vector.broadcast %cst_22 : f32 to vector<16x16xf32>
    %60 = arith.select %52, %58, %59 : vector<16x16xi1>, vector<16x16xf32>
    %cst_23 = arith.constant dense<0.000000e+00> : vector<16xf32>
    %61 = vector.multi_reduction <add>, %60, %cst_23 [1] : vector<16x16xf32> to vector<16xf32>
    %62 = vector.shape_cast %61 : vector<16xf32> to vector<16x1xf32>
    %c1_i32 = arith.constant 1 : i32
    %63 = vector.broadcast %c1_i32 : i32 to vector<16x4xi32>
    %64 = arith.cmpi eq, %4, %63 : vector<16x4xi32>
    %65 = arith.subf %50, %56 : vector<16x1xf32>
    %66 = arith.mulf %62, %65 : vector<16x1xf32>
    %67 = vector.shape_cast %66 : vector<16x1xf32> to vector<16x1xf32>
    %68 = vector.broadcast %67 : vector<16x1xf32> to vector<16x4xf32>
    %69 = arith.select %64, %68, %36 : vector<16x4xi1>, vector<16x4xf32>
    %70 = vector.shape_cast %62 : vector<16x1xf32> to vector<16x1xf32>
    %71 = vector.broadcast %70 : vector<16x1xf32> to vector<16x4xf32>
    %72 = arith.select %64, %71, %39 : vector<16x4xi1>, vector<16x4xf32>
    %c0_24 = arith.constant 0 : index
    %c32 = arith.constant 32 : index
    %73 = vector.load %arg2[%c0_24, %c32] : memref<16x64xf32, #tpu.memory_space<vmem>>, vector<16x16xf32>
    %c0_25 = arith.constant 0 : index
    %c2 = arith.constant 2 : index
    %74 = vector.load %arg3[%c0_25, %c2] : memref<16x4xi32, #tpu.memory_space<vmem>>, vector<16x1xi32>
    %c2_26 = arith.constant 2 : index
    %c0_27 = arith.constant 0 : index
    %75 = vector.load %arg4[%c2_26, %c0_27] : memref<4x16xf32, #tpu.memory_space<vmem>>, vector<1x16xf32>
    %cst_28 = arith.constant dense<0xFF800000> : vector<16xf32>
    %76 = vector.multi_reduction <maximumf>, %73, %cst_28 [1] : vector<16x16xf32> to vector<16xf32>
    %77 = vector.shape_cast %76 : vector<16xf32> to vector<16x1xf32>
    %78 = vector.broadcast %77 : vector<16x1xf32> to vector<16x16xf32>
    %79 = arith.subf %73, %78 : vector<16x16xf32>
    %80 = math.exp %79 : vector<16x16xf32>
    %cst_29 = arith.constant dense<0.000000e+00> : vector<16xf32>
    %81 = vector.multi_reduction <add>, %80, %cst_29 [1] : vector<16x16xf32> to vector<16xf32>
    %82 = vector.shape_cast %81 : vector<16xf32> to vector<16x1xf32>
    %83 = math.log %82 : vector<16x1xf32>
    %84 = vector.broadcast %74 : vector<16x1xi32> to vector<16x16xi32>
    %85 = arith.cmpi eq, %3, %84 : vector<16x16xi32>
    %cst_30 = arith.constant 0.000000e+00 : f32
    %86 = vector.broadcast %cst_30 : f32 to vector<16x16xf32>
    %87 = arith.select %85, %79, %86 : vector<16x16xi1>, vector<16x16xf32>
    %cst_31 = arith.constant dense<0.000000e+00> : vector<16xf32>
    %88 = vector.multi_reduction <add>, %87, %cst_31 [1] : vector<16x16xf32> to vector<16xf32>
    %89 = vector.shape_cast %88 : vector<16xf32> to vector<16x1xf32>
    %cst_32 = arith.constant 0.000000e+00 : f32
    %90 = vector.shape_cast %75 : vector<1x16xf32> to vector<1x16xf32>
    %91 = vector.broadcast %90 : vector<1x16xf32> to vector<16x16xf32>
    %92 = vector.broadcast %cst_32 : f32 to vector<16x16xf32>
    %93 = arith.select %85, %91, %92 : vector<16x16xi1>, vector<16x16xf32>
    %cst_33 = arith.constant dense<0.000000e+00> : vector<16xf32>
    %94 = vector.multi_reduction <add>, %93, %cst_33 [1] : vector<16x16xf32> to vector<16xf32>
    %95 = vector.shape_cast %94 : vector<16xf32> to vector<16x1xf32>
    %c2_i32 = arith.constant 2 : i32
    %96 = vector.broadcast %c2_i32 : i32 to vector<16x4xi32>
    %97 = arith.cmpi eq, %4, %96 : vector<16x4xi32>
    %98 = arith.subf %83, %89 : vector<16x1xf32>
    %99 = arith.mulf %95, %98 : vector<16x1xf32>
    %100 = vector.shape_cast %99 : vector<16x1xf32> to vector<16x1xf32>
    %101 = vector.broadcast %100 : vector<16x1xf32> to vector<16x4xf32>
    %102 = arith.select %97, %101, %69 : vector<16x4xi1>, vector<16x4xf32>
    %103 = vector.shape_cast %95 : vector<16x1xf32> to vector<16x1xf32>
    %104 = vector.broadcast %103 : vector<16x1xf32> to vector<16x4xf32>
    %105 = arith.select %97, %104, %72 : vector<16x4xi1>, vector<16x4xf32>
    %c0_34 = arith.constant 0 : index
    %c48 = arith.constant 48 : index
    %106 = vector.load %arg2[%c0_34, %c48] : memref<16x64xf32, #tpu.memory_space<vmem>>, vector<16x16xf32>
    %c0_35 = arith.constant 0 : index
    %c3 = arith.constant 3 : index
    %107 = vector.load %arg3[%c0_35, %c3] : memref<16x4xi32, #tpu.memory_space<vmem>>, vector<16x1xi32>
    %c3_36 = arith.constant 3 : index
    %c0_37 = arith.constant 0 : index
    %108 = vector.load %arg4[%c3_36, %c0_37] : memref<4x16xf32, #tpu.memory_space<vmem>>, vector<1x16xf32>
    %cst_38 = arith.constant dense<0xFF800000> : vector<16xf32>
    %109 = vector.multi_reduction <maximumf>, %106, %cst_38 [1] : vector<16x16xf32> to vector<16xf32>
    %110 = vector.shape_cast %109 : vector<16xf32> to vector<16x1xf32>
    %111 = vector.broadcast %110 : vector<16x1xf32> to vector<16x16xf32>
    %112 = arith.subf %106, %111 : vector<16x16xf32>
    %113 = math.exp %112 : vector<16x16xf32>
    %cst_39 = arith.constant dense<0.000000e+00> : vector<16xf32>
    %114 = vector.multi_reduction <add>, %113, %cst_39 [1] : vector<16x16xf32> to vector<16xf32>
    %115 = vector.shape_cast %114 : vector<16xf32> to vector<16x1xf32>
    %116 = math.log %115 : vector<16x1xf32>
    %117 = vector.broadcast %107 : vector<16x1xi32> to vector<16x16xi32>
    %118 = arith.cmpi eq, %3, %117 : vector<16x16xi32>
    %cst_40 = arith.constant 0.000000e+00 : f32
    %119 = vector.broadcast %cst_40 : f32 to vector<16x16xf32>
    %120 = arith.select %118, %112, %119 : vector<16x16xi1>, vector<16x16xf32>
    %cst_41 = arith.constant dense<0.000000e+00> : vector<16xf32>
    %121 = vector.multi_reduction <add>, %120, %cst_41 [1] : vector<16x16xf32> to vector<16xf32>
    %122 = vector.shape_cast %121 : vector<16xf32> to vector<16x1xf32>
    %cst_42 = arith.constant 0.000000e+00 : f32
    %123 = vector.shape_cast %108 : vector<1x16xf32> to vector<1x16xf32>
    %124 = vector.broadcast %123 : vector<1x16xf32> to vector<16x16xf32>
    %125 = vector.broadcast %cst_42 : f32 to vector<16x16xf32>
    %126 = arith.select %118, %124, %125 : vector<16x16xi1>, vector<16x16xf32>
    %cst_43 = arith.constant dense<0.000000e+00> : vector<16xf32>
    %127 = vector.multi_reduction <add>, %126, %cst_43 [1] : vector<16x16xf32> to vector<16xf32>
    %128 = vector.shape_cast %127 : vector<16xf32> to vector<16x1xf32>
    %c3_i32 = arith.constant 3 : i32
    %129 = vector.broadcast %c3_i32 : i32 to vector<16x4xi32>
    %130 = arith.cmpi eq, %4, %129 : vector<16x4xi32>
    %131 = arith.subf %116, %122 : vector<16x1xf32>
    %132 = arith.mulf %128, %131 : vector<16x1xf32>
    %133 = vector.shape_cast %132 : vector<16x1xf32> to vector<16x1xf32>
    %134 = vector.broadcast %133 : vector<16x1xf32> to vector<16x4xf32>
    %135 = arith.select %130, %134, %102 : vector<16x4xi1>, vector<16x4xf32>
    %136 = vector.shape_cast %128 : vector<16x1xf32> to vector<16x1xf32>
    %137 = vector.broadcast %136 : vector<16x1xf32> to vector<16x4xf32>
    %138 = arith.select %130, %137, %105 : vector<16x4xi1>, vector<16x4xf32>
    %c0_44 = arith.constant 0 : index
    %c0_45 = arith.constant 0 : index
    %c0_46 = arith.constant 0 : index
    %139 = vector.load %arg5[%c0_44, %c0_45, %c0_46] : memref<1x1x4xf32, #tpu.memory_space<vmem>>, vector<1x1x4xf32>
    %cst_47 = arith.constant dense<0.000000e+00> : vector<4xf32>
    %140 = vector.multi_reduction <add>, %135, %cst_47 [0] : vector<16x4xf32> to vector<4xf32>
    %141 = vector.shape_cast %140 : vector<4xf32> to vector<1x4xf32>
    %142 = vector.shape_cast %141 : vector<1x4xf32> to vector<1x1x4xf32>
    %143 = arith.addf %139, %142 : vector<1x1x4xf32>
    %c0_48 = arith.constant 0 : index
    %c0_49 = arith.constant 0 : index
    %c0_50 = arith.constant 0 : index
    %144 = vector.load %arg5[%c0_48, %c0_49, %c0_50] : memref<1x1x4xf32, #tpu.memory_space<vmem>>, vector<1x1x4xf32>
    tpu.vector_store %arg5[%c0_48, %c0_49, %c0_50], %143 {strides = array<i32>} : memref<1x1x4xf32, #tpu.memory_space<vmem>>, vector<1x1x4xf32>,
    %c0_51 = arith.constant 0 : index
    %c0_52 = arith.constant 0 : index
    %c0_53 = arith.constant 0 : index
    %145 = vector.load %arg6[%c0_51, %c0_52, %c0_53] : memref<1x1x4xf32, #tpu.memory_space<vmem>>, vector<1x1x4xf32>
    %cst_54 = arith.constant dense<0.000000e+00> : vector<4xf32>
    %146 = vector.multi_reduction <add>, %138, %cst_54 [0] : vector<16x4xf32> to vector<4xf32>
    %147 = vector.shape_cast %146 : vector<4xf32> to vector<1x4xf32>
    %148 = vector.shape_cast %147 : vector<1x4xf32> to vector<1x1x4xf32>
    %149 = arith.addf %145, %148 : vector<1x1x4xf32>
    %c0_55 = arith.constant 0 : index
    %c0_56 = arith.constant 0 : index
    %c0_57 = arith.constant 0 : index
    %150 = vector.load %arg6[%c0_55, %c0_56, %c0_57] : memref<1x1x4xf32, #tpu.memory_space<vmem>>, vector<1x1x4xf32>
    tpu.vector_store %arg6[%c0_55, %c0_56, %c0_57], %149 {strides = array<i32>} : memref<1x1x4xf32, #tpu.memory_space<vmem>>, vector<1x1x4xf32>,
    return
  }
  func.func @transform_0(%arg0: i32, %arg1: i32) -> (i32, i32) {
    %c1_i32 = arith.constant 1 : i32
    %0 = arith.muli %arg0, %c1_i32 : i32
    %1 = arith.addi %0, %arg1 : i32
    %c0_i32 = arith.constant 0 : i32
    %2 = arith.minsi %1, %c0_i32 : i32
    %c0_i32_0 = arith.constant 0 : i32
    %c0_i32_1 = arith.constant 0 : i32
    return %2, %c0_i32_0 : i32, i32
  }
  func.func @transform_1(%arg0: i32, %arg1: i32) -> (i32, i32) {
    %c1_i32 = arith.constant 1 : i32
    %0 = arith.muli %arg0, %c1_i32 : i32
    %1 = arith.addi %0, %arg1 : i32
    %c0_i32 = arith.constant 0 : i32
    %2 = arith.minsi %1, %c0_i32 : i32
    %c0_i32_0 = arith.constant 0 : i32
    %c0_i32_1 = arith.constant 0 : i32
    return %2, %c0_i32_0 : i32, i32
  }
  func.func @transform_2(%arg0: i32, %arg1: i32) -> (i32, i32) {
    %c0_i32 = arith.constant 0 : i32
    %c0_i32_0 = arith.constant 0 : i32
    %c0_i32_1 = arith.constant 0 : i32
    return %c0_i32, %c0_i32_0 : i32, i32
  }
  func.func @transform_3(%arg0: i32, %arg1: i32) -> (i32, i32, i32) {
    %c0_i32 = arith.constant 0 : i32
    %c0_i32_0 = arith.constant 0 : i32
    %c0_i32_1 = arith.constant 0 : i32
    return %arg0, %c0_i32, %c0_i32_0 : i32, i32, i32
  }
  func.func @transform_4(%arg0: i32, %arg1: i32) -> (i32, i32, i32) {
    %c0_i32 = arith.constant 0 : i32
    %c0_i32_0 = arith.constant 0 : i32
    %c0_i32_1 = arith.constant 0 : i32
    return %arg0, %c0_i32, %c0_i32_0 : i32, i32, i32
  }
}

</mosaic_0001>

<llo_original>
// kernel: tpu_custom_call.1
$region0: #{tpu_custom_call.1}
  #allocation0 [shape = 'u32[]', space=smem, size = 0x4, offset = 0x4, fixed_abs, tag = 'smem constant byte address 0x4 - core index']
  #allocation1 [shape = 'u32[144,128]{1,0:T(1,128)}', space=vmem, size = 0x12000, scoped, tag = 'internal scratch']
  %s0 = inlined_call_operand.hbm [shape: f32[16,64], index: 0, kind: input, shape index: {}]
  %s1 = inlined_call_operand.hbm [shape: s32[16,4], index: 1, kind: input, shape index: {}]
  %s2 = inlined_call_operand.hbm [shape: f32[4,16], index: 2, kind: input, shape index: {}]
  %s3 = inlined_call_operand.hbm [shape: f32[1,1,4], index: 3, kind: output, shape index: {0}]
  %s4 = inlined_call_operand.hbm [shape: f32[1,1,4], index: 4, kind: output, shape index: {1}]
  %5 = xla_tuple %s3, %s4
  %s6 = sld [smem:[#allocation0]]
  $region46: #{tpu_custom_call.1} parent=0
    _
  %s8 = ssub.s32 1, %s6
  %s9 = scalar_select 0, %s8, %s6
  $region1: #{tpu_custom_call.1} parent=0
    #allocation2 [shape = 'u8[8192]{0}', space=vmem, size = 0x2000, scoped, tag = 'input window, operand 0, single buffered']
    #allocation3 [shape = 's32[1]{0}', space=sflag, size = 0x4, scoped, tag = 'scoped memory for tpu_custom_call.1']
    #allocation4 [shape = 's32[1]{0}', space=sflag, size = 0x4, scoped, tag = 'scoped memory for tpu_custom_call.1']
    #allocation5 [shape = 'u8[8192]{0}', space=vmem, size = 0x2000, scoped, tag = 'input window, operand 1, single buffered']
    #allocation6 [shape = 's32[1]{0}', space=sflag, size = 0x4, scoped, tag = 'scoped memory for tpu_custom_call.1']
    #allocation7 [shape = 'u8[2048]{0}', space=vmem, size = 0x800, scoped, tag = 'input window, operand 2, single buffered']
    #allocation8 [shape = 'u8[512]{0}', space=vmem, size = 0x400, scoped, tag = 'output window, operand 0, single buffered']
    #allocation9 [shape = 'u8[512]{0}', space=vmem, size = 0x400, scoped, tag = 'output window, operand 1, single buffered']
    #allocation10 [shape = 's32[1]{0}', space=sflag, size = 0x4, scoped, tag = 'scoped memory for tpu_custom_call.1']
    %10 = vsyncpa [#allocation3], 0
    %11 = vsyncpa [#allocation6], 0
    %12 = vsyncpa [#allocation4], 0
    %13 = vsyncpa [#allocation10], 0
    // Predicated region
    $region2: #{tpu_custom_call.1} parent=1 // pred_check
      _
    $region3: #{tpu_custom_call.1} parent=1 // pred_check_branch
      %15 = sbr.rel (0) target = $region5
    $region4: #{tpu_custom_call.1} parent=1 // pred_region
      %s16 = sadd.s32 0, 0
      %p17 = scmp.lt.s32.totalorder %s16, 0
      %s18 = scalar_select %p17, %s16, 0
      %s19 = smul.u32 2, %s18
      %s21 = ssub.s32 256, 256
      %22 = vsyncadd [#allocation3], %s21
      %s23 = smul.addr %s19, 128
      %s24 = scalar_lea.hbm %s0, %s23
      %s25 = sshll.u32 [#allocation2], 4
      %s26 = int_to_ptr.vmem [resolvable:$true] %s25
      %31 = dma.hbm_to_vmem [thread:$0]  %s24, 256, %s26, [#allocation3], 128, 128, 8
    $region5: #{tpu_custom_call.1} parent=1 // pred_fallthru
      _
    // Predicated region
    $region6: #{tpu_custom_call.1} parent=1 // pred_check
      _
    $region7: #{tpu_custom_call.1} parent=1 // pred_check_branch
      %33 = sbr.rel (0) target = $region9
    $region8: #{tpu_custom_call.1} parent=1 // pred_region
      %s34 = sadd.s32 0, 0
      %p35 = scmp.lt.s32.totalorder %s34, 0
      %s36 = scalar_select %p35, %s34, 0
      %s37 = smul.u32 2, %s36
      %s39 = ssub.s32 256, 256
      %40 = vsyncadd [#allocation6], %s39
      %s41 = smul.addr %s37, 128
      %s42 = scalar_lea.hbm %s1, %s41
      %s43 = sshll.u32 [#allocation5], 4
      %s44 = int_to_ptr.vmem [resolvable:$true] %s43
      %49 = dma.hbm_to_vmem [thread:$0]  %s42, 256, %s44, [#allocation6], 128, 128, 8
    $region9: #{tpu_custom_call.1} parent=1 // pred_fallthru
      _
    // Predicated region
    $region10: #{tpu_custom_call.1} parent=1 // pred_check
      _
    $region11: #{tpu_custom_call.1} parent=1 // pred_check_branch
      %51 = sbr.rel (0) target = $region13
    $region12: #{tpu_custom_call.1} parent=1 // pred_region
      %s53 = ssub.s32 64, 64
      %54 = vsyncadd [#allocation6], %s53
      %s56 = sshll.u32 [#allocation7], 4
      %s57 = int_to_ptr.vmem [resolvable:$true] %s56
      %59 = dma.hbm_to_vmem [thread:$0]  %s2, 64, %s57, [#allocation6]
    $region13: #{tpu_custom_call.1} parent=1 // pred_fallthru
      _
    // Predicated region
    $region14: #{tpu_custom_call.1} parent=1 // pred_check
      _
    $region15: #{tpu_custom_call.1} parent=1 // pred_check_branch
      %61 = sbr.rel (0) target = $region17
    $region16: #{tpu_custom_call.1} parent=1 // pred_region
      %62 = dma.done [#allocation3], 256
    $region17: #{tpu_custom_call.1} parent=1 // pred_fallthru
      _
    // Predicated region
    $region18: #{tpu_custom_call.1} parent=1 // pred_check
      _
    $region19: #{tpu_custom_call.1} parent=1 // pred_check_branch
      %64 = sbr.rel (0) target = $region21
    $region20: #{tpu_custom_call.1} parent=1 // pred_region
      %65 = dma.done [#allocation6], 256
    $region21: #{tpu_custom_call.1} parent=1 // pred_fallthru
      _
    // Predicated region
    $region22: #{tpu_custom_call.1} parent=1 // pred_check
      _
    $region23: #{tpu_custom_call.1} parent=1 // pred_check_branch
      %67 = sbr.rel (0) target = $region25
    $region24: #{tpu_custom_call.1} parent=1 // pred_region
      %68 = dma.done [#allocation6], 64
    $region25: #{tpu_custom_call.1} parent=1 // pred_fallthru
      _
    %s69 = sadd.s32 0, 0
    %p70 = scmp.lt.s32.totalorder %s69, 0
    %s71 = scalar_select %p70, %s69, 0
    %s72 = smul.u32 2, %s71
    %s73 = sadd.s32 0, 0
    %p74 = scmp.lt.s32.totalorder %s73, 0
    %s75 = scalar_select %p74, %s73, 0
    %s76 = smul.u32 2, %s75
    %p77 = scmp.eq.s32.totalorder 0, 0
    // Predicated region
    $region26: #{tpu_custom_call.1} parent=1 // pred_check
      %p78 = pneg %p77
    $region27: #{tpu_custom_call.1} parent=1 // pred_check_branch
      %80 = sbr.rel (%p78) target = $region29
    $region28: #{tpu_custom_call.1} parent=1 // pred_region
      %vm81 = vcmask 24576
      %82 = vst.msk [vmem:[#allocation8] sm:$0x1] %vm81, 0.0
      %83 = vst.msk [vmem:[#allocation9] sm:$0x1] %vm81, 0.0
    $region29: #{tpu_custom_call.1} parent=1 // pred_fallthru
      _
    %v84 = vlaneseq
    %v85 = vand.u32 %v84, 127
    %v86 = vld [vmem:[#allocation2] sm:$0xff]
    %v87 = vld [vmem:[#allocation2 + $0x8] sm:$0xff]
    %v88 = vld [vmem:[#allocation5] sm:$0xff]
    %v89 = vld [vmem:[#allocation5 + $0x8] sm:$0xff]
    %v90 = vld [vmem:[#allocation7] sm:$0x1]
    %vm91 = vcmask 130048
    %v92 = vsel %vm91, %v86, -inf
    %93 = vmax.xlane.f32.xlu0 %v92
    %v94 = vpop.xlane.xlu0 %93
    %v95 = vsel %vm91, %v87, -inf
    %96 = vmax.xlane.f32.xlu0 %v95
    %v97 = vpop.xlane.xlu0 %96
    %v98 = vsub.f32 %v86, %v94
    %v99 = vsub.f32 %v87, %v97
    %v100 = vmul.f32 %v98, 1.442695
    %v101 = vpow.pop %v100
    %v102 = vmul.f32 %v99, 1.442695
    %v103 = vpow.pop %v102
    %v104 = vsel %vm91, %v101, 0.0
    %105 = vadd.xlane.f32.xlu0 %v104
    %v106 = vpop.xlane.xlu0 %105
    %v107 = vsel %vm91, %v103, 0.0
    %108 = vadd.xlane.f32.xlu0 %v107
    %v109 = vpop.xlane.xlu0 %108
    %v110 = vlog2.pop %v106
    %v111 = vmul.f32 %v110, 0.6931472
    %v112 = vlog2.pop %v109
    %v113 = vmul.f32 %v112, 0.6931472
    %114 = vset.pattern.permute.xlu0 0
    %115 = vperm.xlu0 %114, %v88
    %v116 = vpop.permute.xlu0 %115
    %117 = vset.pattern.permute.xlu0 0
    %118 = vperm.xlu0 %117, %v89
    %v119 = vpop.permute.xlu0 %118
    %vm120 = vcmp.eq.s32.totalorder %v85, %v116
    %vm121 = vcmp.eq.s32.totalorder %v85, %v119
    %v122 = vsel %vm120, %v98, 0.0
    %v123 = vsel %vm121, %v99, 0.0
    %v124 = vsel %vm91, %v122, 0.0
    %125 = vadd.xlane.f32.xlu0 %v124
    %v126 = vpop.xlane.xlu0 %125
    %v127 = vsel %vm91, %v123, 0.0
    %128 = vadd.xlane.f32.xlu0 %v127
    %v129 = vpop.xlane.xlu0 %128
    %v130 = vlaneseq
    %v131 = vshrl.u32 %v130, 7
    %v132 = vsub.s32 0, %v131
    %v133 = vrot.slane %v90, %v132
    %v134 = vsel %vm120, %v133, 0.0
    %v135 = vsel %vm121, %v133, 0.0
    %v136 = vsel %vm91, %v134, 0.0
    %137 = vadd.xlane.f32.xlu0 %v136
    %v138 = vpop.xlane.xlu0 %137
    %v139 = vsel %vm91, %v135, 0.0
    %140 = vadd.xlane.f32.xlu0 %v139
    %v141 = vpop.xlane.xlu0 %140
    %vm142 = vcmp.eq.s32.totalorder %v85, 0
    %v143 = vsub.f32 %v111, %v126
    %v144 = vsub.f32 %v113, %v129
    %v145 = vmul.f32 %v138, %v143
    %v146 = vmul.f32 %v141, %v144
    %v147 = vsel %vm142, %v145, 0.0
    %v148 = vsel %vm142, %v146, 0.0
    %v149 = vsel %vm142, %v138, 0.0
    %v150 = vsel %vm142, %v141, 0.0
    %v151 = vld [vmem:[#allocation7 + $0x1] sm:$0x1]
    %vm152 = vcmask 261248
    %v153 = vsel %vm152, %v86, -inf
    %154 = vmax.xlane.f32.xlu0 %v153
    %v155 = vpop.xlane.xlu0 %154
    %v156 = vsel %vm152, %v87, -inf
    %157 = vmax.xlane.f32.xlu0 %v156
    %v158 = vpop.xlane.xlu0 %157
    %v159 = vsub.f32 %v86, %v155
    %v160 = vsub.f32 %v87, %v158
    %v161 = vmul.f32 %v159, 1.442695
    %v162 = vpow.pop %v161
    %v163 = vmul.f32 %v160, 1.442695
    %v164 = vpow.pop %v163
    %167 = vrot.lane.b32.xlu0 %v162, 112
    %v168 = vpop.permute.xlu0 %167
    %169 = vrot.lane.b32.xlu0 %v164, 112
    %v170 = vpop.permute.xlu0 %169
    %v173 = vsel %vm91, %v168, 0.0
    %174 = vadd.xlane.f32.xlu0 %v173
    %v175 = vpop.xlane.xlu0 %174
    %v176 = vsel %vm91, %v170, 0.0
    %177 = vadd.xlane.f32.xlu0 %v176
    %v178 = vpop.xlane.xlu0 %177
    %v179 = vlog2.pop %v175
    %v180 = vmul.f32 %v179, 0.6931472
    %v181 = vlog2.pop %v178
    %v182 = vmul.f32 %v181, 0.6931472
    %183 = vset.pattern.permute.xlu0 1
    %184 = vperm.xlu0 %183, %v88
    %v185 = vpop.permute.xlu0 %184
    %186 = vset.pattern.permute.xlu0 1
    %187 = vperm.xlu0 %186, %v89
    %v188 = vpop.permute.xlu0 %187
    %vm189 = vcmp.eq.s32.totalorder %v85, %v185
    %vm190 = vcmp.eq.s32.totalorder %v85, %v188
    %193 = vrot.lane.b32.xlu0 %v159, 112
    %v194 = vpop.permute.xlu0 %193
    %195 = vrot.lane.b32.xlu0 %v160, 112
    %v196 = vpop.permute.xlu0 %195
    %v199 = vsel %vm189, %v194, 0.0
    %v200 = vsel %vm190, %v196, 0.0
    %v201 = vsel %vm91, %v199, 0.0
    %202 = vadd.xlane.f32.xlu0 %v201
    %v203 = vpop.xlane.xlu0 %202
    %v204 = vsel %vm91, %v200, 0.0
    %205 = vadd.xlane.f32.xlu0 %v204
    %v206 = vpop.xlane.xlu0 %205
    %v207 = vlaneseq
    %v208 = vshrl.u32 %v207, 7
    %v209 = vsub.s32 0, %v208
    %v210 = vrot.slane %v151, %v209
    %v211 = vsel %vm189, %v210, 0.0
    %v212 = vsel %vm190, %v210, 0.0
    %v213 = vsel %vm91, %v211, 0.0
    %214 = vadd.xlane.f32.xlu0 %v213
    %v215 = vpop.xlane.xlu0 %214
    %v216 = vsel %vm91, %v212, 0.0
    %217 = vadd.xlane.f32.xlu0 %v216
    %v218 = vpop.xlane.xlu0 %217
    %vm219 = vcmp.eq.s32.totalorder %v85, 1
    %v220 = vsub.f32 %v180, %v203
    %v221 = vsub.f32 %v182, %v206
    %v222 = vmul.f32 %v215, %v220
    %v223 = vmul.f32 %v218, %v221
    %v224 = vsel %vm219, %v222, %v147
    %v225 = vsel %vm219, %v223, %v148
    %v226 = vsel %vm219, %v215, %v149
    %v227 = vsel %vm219, %v218, %v150
    %v228 = vld [vmem:[#allocation7 + $0x2] sm:$0x1]
    %vm229 = vcmask 392448
    %v230 = vsel %vm229, %v86, -inf
    %231 = vmax.xlane.f32.xlu0 %v230
    %v232 = vpop.xlane.xlu0 %231
    %v233 = vsel %vm229, %v87, -inf
    %234 = vmax.xlane.f32.xlu0 %v233
    %v235 = vpop.xlane.xlu0 %234
    %v236 = vsub.f32 %v86, %v232
    %v237 = vsub.f32 %v87, %v235
    %v238 = vmul.f32 %v236, 1.442695
    %v239 = vpow.pop %v238
    %v240 = vmul.f32 %v237, 1.442695
    %v241 = vpow.pop %v240
    %244 = vrot.lane.b32.xlu0 %v239, 96
    %v245 = vpop.permute.xlu0 %244
    %246 = vrot.lane.b32.xlu0 %v241, 96
    %v247 = vpop.permute.xlu0 %246
    %v250 = vsel %vm91, %v245, 0.0
    %251 = vadd.xlane.f32.xlu0 %v250
    %v252 = vpop.xlane.xlu0 %251
    %v253 = vsel %vm91, %v247, 0.0
    %254 = vadd.xlane.f32.xlu0 %v253
    %v255 = vpop.xlane.xlu0 %254
    %v256 = vlog2.pop %v252
    %v257 = vmul.f32 %v256, 0.6931472
    %v258 = vlog2.pop %v255
    %v259 = vmul.f32 %v258, 0.6931472
    %260 = vset.pattern.permute.xlu0 2
    %261 = vperm.xlu0 %260, %v88
    %v262 = vpop.permute.xlu0 %261
    %263 = vset.pattern.permute.xlu0 2
    %264 = vperm.xlu0 %263, %v89
    %v265 = vpop.permute.xlu0 %264
    %vm266 = vcmp.eq.s32.totalorder %v85, %v262
    %vm267 = vcmp.eq.s32.totalorder %v85, %v265
    %270 = vrot.lane.b32.xlu0 %v236, 96
    %v271 = vpop.permute.xlu0 %270
    %272 = vrot.lane.b32.xlu0 %v237, 96
    %v273 = vpop.permute.xlu0 %272
    %v276 = vsel %vm266, %v271, 0.0
    %v277 = vsel %vm267, %v273, 0.0
    %v278 = vsel %vm91, %v276, 0.0
    %279 = vadd.xlane.f32.xlu0 %v278
    %v280 = vpop.xlane.xlu0 %279
    %v281 = vsel %vm91, %v277, 0.0
    %282 = vadd.xlane.f32.xlu0 %v281
    %v283 = vpop.xlane.xlu0 %282
    %v284 = vlaneseq
    %v285 = vshrl.u32 %v284, 7
    %v286 = vsub.s32 0, %v285
    %v287 = vrot.slane %v228, %v286
    %v288 = vsel %vm266, %v287, 0.0
    %v289 = vsel %vm267, %v287, 0.0
    %v290 = vsel %vm91, %v288, 0.0
    %291 = vadd.xlane.f32.xlu0 %v290
    %v292 = vpop.xlane.xlu0 %291
    %v293 = vsel %vm91, %v289, 0.0
    %294 = vadd.xlane.f32.xlu0 %v293
    %v295 = vpop.xlane.xlu0 %294
    %vm296 = vcmp.eq.s32.totalorder %v85, 2
    %v297 = vsub.f32 %v257, %v280
    %v298 = vsub.f32 %v259, %v283
    %v299 = vmul.f32 %v292, %v297
    %v300 = vmul.f32 %v295, %v298
    %v301 = vsel %vm296, %v299, %v224
    %v302 = vsel %vm296, %v300, %v225
    %v303 = vsel %vm296, %v292, %v226
    %v304 = vsel %vm296, %v295, %v227
    %v305 = vld [vmem:[#allocation7 + $0x3] sm:$0x1]
    %vm306 = vcmask 523648
    %v307 = vsel %vm306, %v86, -inf
    %308 = vmax.xlane.f32.xlu0 %v307
    %v309 = vpop.xlane.xlu0 %308
    %v310 = vsel %vm306, %v87, -inf
    %311 = vmax.xlane.f32.xlu0 %v310
    %v312 = vpop.xlane.xlu0 %311
    %v313 = vsub.f32 %v86, %v309
    %v314 = vsub.f32 %v87, %v312
    %v315 = vmul.f32 %v313, 1.442695
    %v316 = vpow.pop %v315
    %v317 = vmul.f32 %v314, 1.442695
    %v318 = vpow.pop %v317
    %321 = vrot.lane.b32.xlu0 %v316, 80
    %v322 = vpop.permute.xlu0 %321
    %323 = vrot.lane.b32.xlu0 %v318, 80
    %v324 = vpop.permute.xlu0 %323
    %v327 = vsel %vm91, %v322, 0.0
    %328 = vadd.xlane.f32.xlu0 %v327
    %v329 = vpop.xlane.xlu0 %328
    %v330 = vsel %vm91, %v324, 0.0
    %331 = vadd.xlane.f32.xlu0 %v330
    %v332 = vpop.xlane.xlu0 %331
    %v333 = vlog2.pop %v329
    %v334 = vmul.f32 %v333, 0.6931472
    %v335 = vlog2.pop %v332
    %v336 = vmul.f32 %v335, 0.6931472
    %337 = vset.pattern.permute.xlu0 3
    %338 = vperm.xlu0 %337, %v88
    %v339 = vpop.permute.xlu0 %338
    %340 = vset.pattern.permute.xlu0 3
    %341 = vperm.xlu0 %340, %v89
    %v342 = vpop.permute.xlu0 %341
    %vm343 = vcmp.eq.s32.totalorder %v85, %v339
    %vm344 = vcmp.eq.s32.totalorder %v85, %v342
    %347 = vrot.lane.b32.xlu0 %v313, 80
    %v348 = vpop.permute.xlu0 %347
    %349 = vrot.lane.b32.xlu0 %v314, 80
    %v350 = vpop.permute.xlu0 %349
    %v353 = vsel %vm343, %v348, 0.0
    %v354 = vsel %vm344, %v350, 0.0
    %v355 = vsel %vm91, %v353, 0.0
    %356 = vadd.xlane.f32.xlu0 %v355
    %v357 = vpop.xlane.xlu0 %356
    %v358 = vsel %vm91, %v354, 0.0
    %359 = vadd.xlane.f32.xlu0 %v358
    %v360 = vpop.xlane.xlu0 %359
    %v361 = vlaneseq
    %v362 = vshrl.u32 %v361, 7
    %v363 = vsub.s32 0, %v362
    %v364 = vrot.slane %v305, %v363
    %v365 = vsel %vm343, %v364, 0.0
    %v366 = vsel %vm344, %v364, 0.0
    %v367 = vsel %vm91, %v365, 0.0
    %368 = vadd.xlane.f32.xlu0 %v367
    %v369 = vpop.xlane.xlu0 %368
    %v370 = vsel %vm91, %v366, 0.0
    %371 = vadd.xlane.f32.xlu0 %v370
    %v372 = vpop.xlane.xlu0 %371
    %vm373 = vcmp.eq.s32.totalorder %v85, 3
    %v374 = vsub.f32 %v334, %v357
    %v375 = vsub.f32 %v336, %v360
    %v376 = vmul.f32 %v369, %v374
    %v377 = vmul.f32 %v372, %v375
    %v378 = vsel %vm373, %v376, %v301
    %v379 = vsel %vm373, %v377, %v302
    %v380 = vsel %vm373, %v369, %v303
    %v381 = vsel %vm373, %v372, %v304
    %v382 = vld [vmem:[#allocation8] sm:$0x1]
    %vm383 = vcmask 31744
    %v384 = vsel %vm383, %v378, 0.0
    %v385 = vsel %vm383, %v379, 0.0
    %v386 = vadd.f32 %v384, %v385
    %v387 = vrot.slane %v386, 4
    %v388 = vadd.f32 %v386, %v387
    %v389 = vrot.slane %v388, 2
    %v390 = vadd.f32 %v388, %v389
    %v391 = vrot.slane %v390, 1
    %v392 = vadd.f32 %v390, %v391
    %v393 = vadd.f32 %v382, %v392
    %vm394 = vcmask 24576
    %395 = vst.msk [vmem:[#allocation8] sm:$0x1] %vm394, %v393
    %v396 = vld [vmem:[#allocation9] sm:$0x1]
    %v397 = vsel %vm383, %v380, 0.0
    %v398 = vsel %vm383, %v381, 0.0
    %v399 = vadd.f32 %v397, %v398
    %v400 = vrot.slane %v399, 4
    %v401 = vadd.f32 %v399, %v400
    %v402 = vrot.slane %v401, 2
    %v403 = vadd.f32 %v401, %v402
    %v404 = vrot.slane %v403, 1
    %v405 = vadd.f32 %v403, %v404
    %v406 = vadd.f32 %v396, %v405
    %407 = vst.msk [vmem:[#allocation9] sm:$0x1] %vm394, %v406
    // Predicated region
    $region30: #{tpu_custom_call.1} parent=1 // pred_check
      _
    $region31: #{tpu_custom_call.1} parent=1 // pred_check_branch
      %409 = sbr.rel (0) target = $region33
    $region32: #{tpu_custom_call.1} parent=1 // pred_region
      %s411 = ssub.s32 16, 16
      %412 = vsyncadd [#allocation4], %s411
      %s414 = sshll.u32 [#allocation8], 4
      %s415 = int_to_ptr.vmem [resolvable:$true] %s414
      %417 = dma.vmem_to_hbm [thread:$0]  %s415, 16, %s3, [#allocation4]
    $region33: #{tpu_custom_call.1} parent=1 // pred_fallthru
      _
    // Predicated region
    $region34: #{tpu_custom_call.1} parent=1 // pred_check
      _
    $region35: #{tpu_custom_call.1} parent=1 // pred_check_branch
      %419 = sbr.rel (0) target = $region37
    $region36: #{tpu_custom_call.1} parent=1 // pred_region
      %s421 = ssub.s32 16, 16
      %422 = vsyncadd [#allocation10], %s421
      %s424 = sshll.u32 [#allocation9], 4
      %s425 = int_to_ptr.vmem [resolvable:$true] %s424
      %427 = dma.vmem_to_hbm [thread:$0]  %s425, 16, %s4, [#allocation10]
    $region37: #{tpu_custom_call.1} parent=1 // pred_fallthru
      _
    // Predicated region
    $region38: #{tpu_custom_call.1} parent=1 // pred_check
      _
    $region39: #{tpu_custom_call.1} parent=1 // pred_check_branch
      %429 = sbr.rel (0) target = $region41
    $region40: #{tpu_custom_call.1} parent=1 // pred_region
      %430 = dma.done [#allocation4], 16
    $region41: #{tpu_custom_call.1} parent=1 // pred_fallthru
      _
    // Predicated region
    $region42: #{tpu_custom_call.1} parent=1 // pred_check
      _
    $region43: #{tpu_custom_call.1} parent=1 // pred_check_branch
      %432 = sbr.rel (0) target = $region45
    $region44: #{tpu_custom_call.1} parent=1 // pred_region
      %433 = dma.done [#allocation10], 16
    $region45: #{tpu_custom_call.1} parent=1 // pred_fallthru
      _
    %434 = vsyncpa [#allocation3], 1
    %435 = vsyncpa [#allocation6], 1
    %436 = vsyncpa [#allocation4], 1
    %437 = vsyncpa [#allocation10], 1

</llo_original>
